<compile_context>
chip_gen: v5e
topology: v5e:2x2
jax: 0.10.0
libtpu: 0.0.40
codegen_flags: <defaults>
</compile_context>

<pallas_src>
import jax
import jax.numpy as jnp
from jax import lax
from jax.experimental import pallas as pl
from jax.experimental.pallas import tpu as pltpu


def _cdiv(a, b):
    return -(-a // b)


def _round_up(a, b):
    return _cdiv(a, b) * b


def _gcd(a, b):
    while b:
        a, b = b, a % b
    return a


def polar_iou(pred, gt, *, tile_packed_rows=512,
              vmem_limit_bytes=48 * 1024 * 1024):
    """PolarIoU loss: mean over rows of log(sum(max(pred,gt)) / sum(min(pred,gt)))."""
    assert pred.shape == gt.shape
    k = pred.shape[-1]
    pred2 = pred.reshape(-1, k)          # keep caller dtype (bf16 stays bf16)
    gt2 = gt.reshape(-1, k)
    rows = pred2.shape[0]

    # Pack GROUP original rows into one lane-dense packed row of width
    # W = GROUP*K, with W an exact multiple of 128 lanes (K=36 -> GROUP=32,
    # W=1152 = 9*128).
    group = 128 // _gcd(k, 128)
    w = group * k

    # The packed reshape is a free bitcast only if rows % group == 0.
    # Otherwise pad with <= group-1 rows of ones (each contributes log(1)=0).
    # TODO(synk): when rows % group != 0 this concat costs one extra HBM pass;
    # avoiding it entirely would need manual (pl.ANY) DMA of the ragged tail.
    rows_padded = _round_up(rows, group)
    if rows_padded != rows:
        pad = rows_padded - rows
        pred2 = jnp.concatenate([pred2, jnp.ones((pad, k), pred2.dtype)], axis=0)
        gt2 = jnp.concatenate([gt2, jnp.ones((pad, k), gt2.dtype)], axis=0)

    p_rows = rows_padded // group                  # number of valid packed rows
    pred_p = pred2.reshape(p_rows, w)
    gt_p = gt2.reshape(p_rows, w)

    # Packed rows per grid step: big enough to amortize the ~0.35us/step fixed
    # cost, clamped so we get >= 4 grid steps when possible (megacore sharding
    # on v7x + DMA/compute pipelining), a multiple of 8 sublanes, and never
    # larger than the array (a block equal to the full dim is always legal).
    tile = min(tile_packed_rows, _round_up(_cdiv(p_rows, 4), 8))
    tile = max(tile, 8)
    if tile > p_rows:
        tile = p_rows
    num_tiles = _cdiv(p_rows, tile)

    def kernel(pred_ref, gt_ref, out_ref):
        # Single cast point (inputs may be bf16 or f32).
        p = pred_ref[...].astype(jnp.float32)      # (tile, W)
        g = gt_ref[...].astype(jnp.float32)
        dmax = jnp.maximum(p, g)                   # == stack().max(0)
        dmin = jnp.minimum(p, g)                   # == stack().min(0)

        # Constant 0/1 segment indicator: seg[c, s] = 1 iff lane c belongs to
        # original-row segment s (s*K <= c < (s+1)*K).  One MXU matmul turns
        # the lane-dense layout back into per-original-row sums.
        c_idx = lax.broadcasted_iota(jnp.int32, (w, group), 0)
        s_idx = lax.broadcasted_iota(jnp.int32, (w, group), 1)
        delta = c_idx - s_idx * k
        seg = jnp.where((delta >= 0) & (delta < k), 1.0, 0.0).astype(jnp.float32)

        smax = jnp.dot(dmax, seg, preferred_element_type=jnp.float32)  # (tile, group)
        smin = jnp.dot(dmin, seg, preferred_element_type=jnp.float32)

        # Mask packed rows beyond p_rows (garbage reads in the last partial
        # block): force smax = smin = 1 BEFORE the divide/log so garbage can
        # never become Inf/NaN, and the masked rows contribute log(1) = 0.
        row = pl.program_id(0) * tile + lax.broadcasted_iota(
            jnp.int32, (tile, group), 0)
        valid = row < p_rows
        smax = jnp.where(valid, smax, 1.0)
        smin = jnp.where(valid, smin, 1.0)

        tile_sum = jnp.sum(jnp.log(smax / smin))   # per-tile partial (scalar)
        out_ref[...] = jnp.full(out_ref.shape, tile_sum, dtype=jnp.float32)

    partials = pl.pallas_call(
        kernel,
        out_shape=jax.ShapeDtypeStruct((num_tiles, 1, 128), jnp.float32),
        grid_spec=pltpu.PrefetchScalarGridSpec(
            num_scalar_prefetch=0,
            grid=(num_tiles,),
            in_specs=[
                pl.BlockSpec((tile, w), lambda i: (i, 0)),
                pl.BlockSpec((tile, w), lambda i: (i, 0)),
            ],
            out_specs=pl.BlockSpec((1, 1, 128), lambda i: (i, 0, 0)),
        ),
        compiler_params=pltpu.CompilerParams(
            dimension_semantics=("parallel",),     # independent tiles -> both TCs
            vmem_limit_bytes=vmem_limit_bytes,
        ),
    )(pred_p, gt_p)

    # Rows padded to a multiple of GROUP contribute exactly 0; divide by the
    # true row count.
    return jnp.sum(partials[:, 0, 0]) / rows


def polar_iou_ref(pred, gt):
    dmax = jnp.maximum(pred, gt)
    dmin = jnp.minimum(pred, gt)
    loss = jnp.log(jnp.sum(dmax, axis=-1) / jnp.sum(dmin, axis=-1))
    return jnp.mean(loss)


if __name__ == "__main__":
    key = jax.random.PRNGKey(0)
    k1, k2, k3, k4, k5, k6 = jax.random.split(key, 6)

    # (B, N, K) positive "polar distances": 2 images x 64 locations x 36 rays.
    # rows = 128 (multiple of 32 -> pure bitcast repack, single grid step).
    pred = jax.random.uniform(k1, (2, 64, 36), dtype=jnp.float32,
                              minval=0.5, maxval=2.0)
    gt = jax.random.uniform(k2, (2, 64, 36), dtype=jnp.float32,
                            minval=0.5, maxval=2.0)
    out = polar_iou(pred, gt)
    jax.block_until_ready(out)
    ref = polar_iou_ref(pred, gt)
    assert jnp.allclose(out, ref, rtol=1e-4, atol=1e-6), (out, ref)

    # Ragged row count (rows = 150 -> 10 padded rows of ones, packed P = 5).
    pred_r = jax.random.uniform(k3, (3, 50, 36), dtype=jnp.float32,
                                minval=0.5, maxval=2.0)
    gt_r = jax.random.uniform(k4, (3, 50, 36), dtype=jnp.float32,
                              minval=0.5, maxval=2.0)
    out_r = polar_iou(pred_r, gt_r)
    jax.block_until_ready(out_r)
    ref_r = polar_iou_ref(pred_r, gt_r)
    assert jnp.allclose(out_r, ref_r, rtol=1e-4, atol=1e-6), (out_r, ref_r)

    # rows = 640 -> P = 20, tile = 8, grid = 3 with a partial last block:
    # exercises the in-kernel tail masking and multi-step partial-sum output.
    pred_g = jax.random.uniform(k5, (4, 160, 36), dtype=jnp.float32,
                                minval=0.5, maxval=2.0)
    gt_g = jax.random.uniform(k6, (4, 160, 36), dtype=jnp.float32,
                              minval=0.5, maxval=2.0)
    out_g = polar_iou(pred_g, gt_g)
    jax.block_until_ready(out_g)
    ref_g = polar_iou_ref(pred_g, gt_g)
    assert jnp.allclose(out_g, ref_g, rtol=1e-4, atol=1e-6), (out_g, ref_g)

    # bf16 ingestion path (inputs DMA'd as bf16, cast to f32 in the kernel).
    out_bf = polar_iou(pred.astype(jnp.bfloat16), gt.astype(jnp.bfloat16))
    jax.block_until_ready(out_bf)
    ref_bf = polar_iou_ref(pred.astype(jnp.bfloat16).astype(jnp.float32),
                           gt.astype(jnp.bfloat16).astype(jnp.float32))
    assert jnp.allclose(out_bf, ref_bf, rtol=2e-2, atol=1e-3), (out_bf, ref_bf)

    print("KERNEL_OK")
</pallas_src>

<mosaic_0001>
module attributes {stable_mosaic.version = 11 : i64} {
  func.func @kernel(%arg0: i32, %arg1: memref<4x1152xf32, #tpu.memory_space<vmem>>, %arg2: memref<4x1152xf32, #tpu.memory_space<vmem>>, %arg3: memref<1x1x128xf32, #tpu.memory_space<vmem>>) attributes {dimension_semantics = [#tpu.dimension_semantics<parallel>], iteration_bounds = array<i64: 1>, scalar_prefetch = 0 : i64, scratch_operands = 0 : i64, tpu.core_type = #tpu.core_type<tc>, window_params = [{transform_indices = @transform_0, window_bounds = array<i64: 4, 1152>}, {transform_indices = @transform_1, window_bounds = array<i64: 4, 1152>}, {transform_indices = @transform_2, window_bounds = array<i64: 1, 1, 128>}]} {
    %c0 = arith.constant 0 : index
    %c0_0 = arith.constant 0 : index
    %0 = vector.load %arg1[%c0, %c0_0] : memref<4x1152xf32, #tpu.memory_space<vmem>>, vector<4x1152xf32>
    %c0_1 = arith.constant 0 : index
    %c0_2 = arith.constant 0 : index
    %1 = vector.load %arg2[%c0_1, %c0_2] : memref<4x1152xf32, #tpu.memory_space<vmem>>, vector<4x1152xf32>
    %2 = arith.maximumf %0, %1 : vector<4x1152xf32>
    %3 = arith.minimumf %0, %1 : vector<4x1152xf32>
    %4 = tpu.iota {dimensions = array<i32: 0>} : vector<1152x32xi32>
    %5 = tpu.iota {dimensions = array<i32: 1>} : vector<1152x32xi32>
    %c36_i32 = arith.constant 36 : i32
    %6 = vector.broadcast %c36_i32 : i32 to vector<1152x32xi32>
    %7 = arith.muli %5, %6 : vector<1152x32xi32>
    %8 = arith.subi %4, %7 : vector<1152x32xi32>
    %c0_i32 = arith.constant 0 : i32
    %9 = vector.broadcast %c0_i32 : i32 to vector<1152x32xi32>
    %10 = arith.cmpi sge, %8, %9 : vector<1152x32xi32>
    %c36_i32_3 = arith.constant 36 : i32
    %11 = vector.broadcast %c36_i32_3 : i32 to vector<1152x32xi32>
    %12 = arith.cmpi slt, %8, %11 : vector<1152x32xi32>
    %13 = arith.andi %10, %12 : vector<1152x32xi1>
    %cst = arith.constant 1.000000e+00 : f32
    %cst_4 = arith.constant 0.000000e+00 : f32
    %14 = vector.broadcast %cst : f32 to vector<1152x32xf32>
    %15 = vector.broadcast %cst_4 : f32 to vector<1152x32xf32>
    %16 = arith.select %13, %14, %15 : vector<1152x32xi1>, vector<1152x32xf32>
    %cst_5 = arith.constant dense<0.000000e+00> : vector<4x32xf32>
    %17 = tpu.matmul %2, %16, %cst_5 {dimension_numbers = #tpu.dot_dimension_numbers<[1], [0], [0], [1], [0, 0, 1, 1], [], []>} : vector<4x1152xf32>, vector<1152x32xf32>, vector<4x32xf32> -> vector<4x32xf32>
    %cst_6 = arith.constant dense<0.000000e+00> : vector<4x32xf32>
    %18 = tpu.matmul %3, %16, %cst_6 {dimension_numbers = #tpu.dot_dimension_numbers<[1], [0], [0], [1], [0, 0, 1, 1], [], []>} : vector<4x1152xf32>, vector<1152x32xf32>, vector<4x32xf32> -> vector<4x32xf32>
    %c4_i32 = arith.constant 4 : i32
    %19 = arith.muli %arg0, %c4_i32 : i32
    %20 = tpu.iota {dimensions = array<i32: 0>} : vector<4x32xi32>
    %21 = vector.broadcast %19 : i32 to vector<4x32xi32>
    %22 = arith.addi %21, %20 : vector<4x32xi32>
    %c4_i32_7 = arith.constant 4 : i32
    %23 = vector.broadcast %c4_i32_7 : i32 to vector<4x32xi32>
    %24 = arith.cmpi slt, %22, %23 : vector<4x32xi32>
    %cst_8 = arith.constant 1.000000e+00 : f32
    %25 = vector.broadcast %cst_8 : f32 to vector<4x32xf32>
    %26 = arith.select %24, %17, %25 : vector<4x32xi1>, vector<4x32xf32>
    %cst_9 = arith.constant 1.000000e+00 : f32
    %27 = vector.broadcast %cst_9 : f32 to vector<4x32xf32>
    %28 = arith.select %24, %18, %27 : vector<4x32xi1>, vector<4x32xf32>
    %29 = arith.divf %26, %28 : vector<4x32xf32>
    %30 = math.log %29 : vector<4x32xf32>
    %31 = vector.shape_cast %30 : vector<4x32xf32> to vector<1x4x32xf32>
    %cst_10 = arith.constant dense<0.000000e+00> : vector<1xf32>
    %32 = vector.multi_reduction <add>, %31, %cst_10 [1, 2] : vector<1x4x32xf32> to vector<1xf32>
    %33 = vector.shape_cast %32 : vector<1xf32> to vector<1x1x1xf32>
    %34 = vector.extract %33[0, 0, 0] : f32 from vector<1x1x1xf32>
    %35 = vector.broadcast %34 : f32 to vector<1x1x128xf32>
    %c0_11 = arith.constant 0 : index
    %c0_12 = arith.constant 0 : index
    %c0_13 = arith.constant 0 : index
    %36 = vector.load %arg3[%c0_11, %c0_12, %c0_13] : memref<1x1x128xf32, #tpu.memory_space<vmem>>, vector<1x1x128xf32>
    tpu.vector_store %arg3[%c0_11, %c0_12, %c0_13], %35 {strides = array<i32>} : memref<1x1x128xf32, #tpu.memory_space<vmem>>, vector<1x1x128xf32>,
    return
  }
  func.func @transform_0(%arg0: i32) -> (i32, i32) {
    %c0_i32 = arith.constant 0 : i32
    %c0_i32_0 = arith.constant 0 : i32
    return %arg0, %c0_i32 : i32, i32
  }
  func.func @transform_1(%arg0: i32) -> (i32, i32) {
    %c0_i32 = arith.constant 0 : i32
    %c0_i32_0 = arith.constant 0 : i32
    return %arg0, %c0_i32 : i32, i32
  }
  func.func @transform_2(%arg0: i32) -> (i32, i32, i32) {
    %c0_i32 = arith.constant 0 : i32
    %c0_i32_0 = arith.constant 0 : i32
    %c0_i32_1 = arith.constant 0 : i32
    return %arg0, %c0_i32, %c0_i32_0 : i32, i32, i32
  }
}

</mosaic_0001>

<llo_original>
// kernel: tpu_custom_call.1
$region0: #{tpu_custom_call.1}
  #allocation0 [shape = 'u32[]', space=smem, size = 0x4, offset = 0x4, fixed_abs, tag = 'smem constant byte address 0x4 - core index']
  #allocation1 [shape = 'u32[72,128]{1,0:T(1,128)}', space=vmem, size = 0x9000, scoped, tag = 'internal scratch']
  %s0 = inlined_call_operand.hbm [shape: f32[4,1152], index: 0, kind: input, shape index: {}]
  %s1 = inlined_call_operand.hbm [shape: f32[4,1152], index: 1, kind: input, shape index: {}]
  %s2 = inlined_call_operand.hbm [shape: f32[1,1,128], index: 2, kind: output, shape index: {}]
  %s3 = sld [smem:[#allocation0]]
  $region26: #{tpu_custom_call.1} parent=0
    _
  %s5 = ssub.s32 1, %s3
  %s6 = scalar_select 0, %s5, %s3
  $region1: #{tpu_custom_call.1} parent=0
    #allocation2 [shape = 'u8[18432]{0}', space=vmem, size = 0x4800, scoped, tag = 'input window, operand 0, single buffered']
    #allocation3 [shape = 's32[1]{0}', space=sflag, size = 0x4, scoped, tag = 'scoped memory for tpu_custom_call.1']
    #allocation4 [shape = 's32[1]{0}', space=sflag, size = 0x4, scoped, tag = 'scoped memory for tpu_custom_call.1']
    #allocation5 [shape = 'u8[18432]{0}', space=vmem, size = 0x4800, scoped, tag = 'input window, operand 1, single buffered']
    #allocation6 [shape = 's32[1]{0}', space=sflag, size = 0x4, scoped, tag = 'scoped memory for tpu_custom_call.1']
    #allocation7 [shape = 'u8[512]{0}', space=vmem, size = 0x400, scoped, tag = 'output window, operand 0, single buffered']
    %7 = vsyncpa [#allocation3], 0
    %8 = vsyncpa [#allocation6], 0
    %9 = vsyncpa [#allocation4], 0
    // Predicated region
    $region2: #{tpu_custom_call.1} parent=1 // pred_check
      _
    $region3: #{tpu_custom_call.1} parent=1 // pred_check_branch
      %11 = sbr.rel (0) target = $region5
    $region4: #{tpu_custom_call.1} parent=1 // pred_region
      %13 = vsyncadd [#allocation3], 0
      %s15 = sshll.u32 %s0, 4
      %s16 = int_to_ptr.hbm [resolvable:$true] %s15
      %s17 = sshll.u32 [#allocation2], 4
      %s18 = int_to_ptr.vmem [resolvable:$true] %s17
      %20 = dma.hbm_to_vmem [thread:$0]  %s16, 576, %s18, [#allocation3]
    $region5: #{tpu_custom_call.1} parent=1 // pred_fallthru
      _
    // Predicated region
    $region6: #{tpu_custom_call.1} parent=1 // pred_check
      _
    $region7: #{tpu_custom_call.1} parent=1 // pred_check_branch
      %22 = sbr.rel (0) target = $region9
    $region8: #{tpu_custom_call.1} parent=1 // pred_region
      %24 = vsyncadd [#allocation6], 0
      %s26 = sshll.u32 %s1, 4
      %s27 = int_to_ptr.hbm [resolvable:$true] %s26
      %s28 = sshll.u32 [#allocation5], 4
      %s29 = int_to_ptr.vmem [resolvable:$true] %s28
      %31 = dma.hbm_to_vmem [thread:$0]  %s27, 576, %s29, [#allocation6]
    $region9: #{tpu_custom_call.1} parent=1 // pred_fallthru
      _
    // Predicated region
    $region10: #{tpu_custom_call.1} parent=1 // pred_check
      _
    $region11: #{tpu_custom_call.1} parent=1 // pred_check_branch
      %33 = sbr.rel (0) target = $region13
    $region12: #{tpu_custom_call.1} parent=1 // pred_region
      %35 = dma.done [#allocation3], 576
    $region13: #{tpu_custom_call.1} parent=1 // pred_fallthru
      _
    // Predicated region
    $region14: #{tpu_custom_call.1} parent=1 // pred_check
      _
    $region15: #{tpu_custom_call.1} parent=1 // pred_check_branch
      %37 = sbr.rel (0) target = $region17
    $region16: #{tpu_custom_call.1} parent=1 // pred_region
      %39 = dma.done [#allocation6], 576
    $region17: #{tpu_custom_call.1} parent=1 // pred_fallthru
      _
    %v40 = vld [vmem:[#allocation2] sm:$0xff]
    %v41 = vld [vmem:[#allocation2 + $0x8] sm:$0xff]
    %v42 = vld [vmem:[#allocation2 + $0x10] sm:$0xff]
    %v43 = vld [vmem:[#allocation2 + $0x18] sm:$0xff]
    %v44 = vld [vmem:[#allocation2 + $0x20] sm:$0xf]
    %v45 = vld [vmem:[#allocation5] sm:$0xff]
    %v46 = vld [vmem:[#allocation5 + $0x8] sm:$0xff]
    %v47 = vld [vmem:[#allocation5 + $0x10] sm:$0xff]
    %v48 = vld [vmem:[#allocation5 + $0x18] sm:$0xff]
    %v49 = vld [vmem:[#allocation5 + $0x20] sm:$0xf]
    %v50 = vmax.f32 %v40, %v45
    %v51 = vmax.f32 %v41, %v46
    %v52 = vmax.f32 %v42, %v47
    %v53 = vmax.f32 %v43, %v48
    %v54 = vmax.f32 %v44, %v49
    %v55 = vmin.f32 %v40, %v45
    %v56 = vmin.f32 %v41, %v46
    %v57 = vmin.f32 %v42, %v47
    %v58 = vmin.f32 %v43, %v48
    %v59 = vmin.f32 %v44, %v49
    %v60 = vlaneseq
    %v61 = vshrl.u32 %v60, 7
    %v62 = vadd.s32 %v61, 8
    %v63 = vadd.s32 %v61, 16
    %v64 = vadd.s32 %v61, 24
    %v65 = vadd.s32 %v61, 32
    %v66 = vadd.s32 %v61, 40
    %v67 = vadd.s32 %v61, 48
    %v68 = vadd.s32 %v61, 56
    %v69 = vadd.s32 %v61, 64
    %v70 = vadd.s32 %v61, 72
    %v71 = vadd.s32 %v61, 80
    %v72 = vadd.s32 %v61, 88
    %v73 = vadd.s32 %v61, 96
    %v74 = vadd.s32 %v61, 104
    %v75 = vadd.s32 %v61, 112
    %v76 = vadd.s32 %v61, 120
    %v77 = vadd.s32 %v61, 128
    %v78 = vadd.s32 %v61, 136
    %v79 = vadd.s32 %v61, 144
    %v80 = vadd.s32 %v61, 152
    %v81 = vadd.s32 %v61, 160
    %v82 = vadd.s32 %v61, 168
    %v83 = vadd.s32 %v61, 176
    %v84 = vadd.s32 %v61, 184
    %v85 = vadd.s32 %v61, 192
    %v86 = vadd.s32 %v61, 200
    %v87 = vadd.s32 %v61, 208
    %v88 = vadd.s32 %v61, 216
    %v89 = vadd.s32 %v61, 224
    %v90 = vadd.s32 %v61, 232
    %v91 = vadd.s32 %v61, 240
    %v92 = vadd.s32 %v61, 248
    %v93 = vadd.s32 %v61, 256
    %v94 = vadd.s32 %v61, 264
    %v95 = vadd.s32 %v61, 272
    %v96 = vadd.s32 %v61, 280
    %v97 = vadd.s32 %v61, 288
    %v98 = vadd.s32 %v61, 296
    %v99 = vadd.s32 %v61, 304
    %v100 = vadd.s32 %v61, 312
    %v101 = vadd.s32 %v61, 320
    %v102 = vadd.s32 %v61, 328
    %v103 = vadd.s32 %v61, 336
    %v104 = vadd.s32 %v61, 344
    %v105 = vadd.s32 %v61, 352
    %v106 = vadd.s32 %v61, 360
    %v107 = vadd.s32 %v61, 368
    %v108 = vadd.s32 %v61, 376
    %v109 = vadd.s32 %v61, 384
    %v110 = vadd.s32 %v61, 392
    %v111 = vadd.s32 %v61, 400
    %v112 = vadd.s32 %v61, 408
    %v113 = vadd.s32 %v61, 416
    %v114 = vadd.s32 %v61, 424
    %v115 = vadd.s32 %v61, 432
    %v116 = vadd.s32 %v61, 440
    %v117 = vadd.s32 %v61, 448
    %v118 = vadd.s32 %v61, 456
    %v119 = vadd.s32 %v61, 464
    %v120 = vadd.s32 %v61, 472
    %v121 = vadd.s32 %v61, 480
    %v122 = vadd.s32 %v61, 488
    %v123 = vadd.s32 %v61, 496
    %v124 = vadd.s32 %v61, 504
    %v125 = vadd.s32 %v61, 512
    %v126 = vadd.s32 %v61, 520
    %v127 = vadd.s32 %v61, 528
    %v128 = vadd.s32 %v61, 536
    %v129 = vadd.s32 %v61, 544
    %v130 = vadd.s32 %v61, 552
    %v131 = vadd.s32 %v61, 560
    %v132 = vadd.s32 %v61, 568
    %v133 = vadd.s32 %v61, 576
    %v134 = vadd.s32 %v61, 584
    %v135 = vadd.s32 %v61, 592
    %v136 = vadd.s32 %v61, 600
    %v137 = vadd.s32 %v61, 608
    %v138 = vadd.s32 %v61, 616
    %v139 = vadd.s32 %v61, 624
    %v140 = vadd.s32 %v61, 632
    %v141 = vadd.s32 %v61, 640
    %v142 = vadd.s32 %v61, 648
    %v143 = vadd.s32 %v61, 656
    %v144 = vadd.s32 %v61, 664
    %v145 = vadd.s32 %v61, 672
    %v146 = vadd.s32 %v61, 680
    %v147 = vadd.s32 %v61, 688
    %v148 = vadd.s32 %v61, 696
    %v149 = vadd.s32 %v61, 704
    %v150 = vadd.s32 %v61, 712
    %v151 = vadd.s32 %v61, 720
    %v152 = vadd.s32 %v61, 728
    %v153 = vadd.s32 %v61, 736
    %v154 = vadd.s32 %v61, 744
    %v155 = vadd.s32 %v61, 752
    %v156 = vadd.s32 %v61, 760
    %v157 = vadd.s32 %v61, 768
    %v158 = vadd.s32 %v61, 776
    %v159 = vadd.s32 %v61, 784
    %v160 = vadd.s32 %v61, 792
    %v161 = vadd.s32 %v61, 800
    %v162 = vadd.s32 %v61, 808
    %v163 = vadd.s32 %v61, 816
    %v164 = vadd.s32 %v61, 824
    %v165 = vadd.s32 %v61, 832
    %v166 = vadd.s32 %v61, 840
    %v167 = vadd.s32 %v61, 848
    %v168 = vadd.s32 %v61, 856
    %v169 = vadd.s32 %v61, 864
    %v170 = vadd.s32 %v61, 872
    %v171 = vadd.s32 %v61, 880
    %v172 = vadd.s32 %v61, 888
    %v173 = vadd.s32 %v61, 896
    %v174 = vadd.s32 %v61, 904
    %v175 = vadd.s32 %v61, 912
    %v176 = vadd.s32 %v61, 920
    %v177 = vadd.s32 %v61, 928
    %v178 = vadd.s32 %v61, 936
    %v179 = vadd.s32 %v61, 944
    %v180 = vadd.s32 %v61, 952
    %v181 = vadd.s32 %v61, 960
    %v182 = vadd.s32 %v61, 968
    %v183 = vadd.s32 %v61, 976
    %v184 = vadd.s32 %v61, 984
    %v185 = vadd.s32 %v61, 992
    %v186 = vadd.s32 %v61, 1000
    %v187 = vadd.s32 %v61, 1008
    %v188 = vadd.s32 %v61, 1016
    %v189 = vadd.s32 %v61, 1024
    %v190 = vadd.s32 %v61, 1032
    %v191 = vadd.s32 %v61, 1040
    %v192 = vadd.s32 %v61, 1048
    %v193 = vadd.s32 %v61, 1056
    %v194 = vadd.s32 %v61, 1064
    %v195 = vadd.s32 %v61, 1072
    %v196 = vadd.s32 %v61, 1080
    %v197 = vadd.s32 %v61, 1088
    %v198 = vadd.s32 %v61, 1096
    %v199 = vadd.s32 %v61, 1104
    %v200 = vadd.s32 %v61, 1112
    %v201 = vadd.s32 %v61, 1120
    %v202 = vadd.s32 %v61, 1128
    %v203 = vadd.s32 %v61, 1136
    %v204 = vadd.s32 %v61, 1144
    %v205 = vlaneseq
    %v206 = vand.u32 %v205, 127
    %v207 = vmul.u32 %v206, 36
    %v208 = vsub.s32 %v61, %v207
    %v209 = vsub.s32 %v62, %v207
    %v210 = vsub.s32 %v63, %v207
    %v211 = vsub.s32 %v64, %v207
    %v212 = vsub.s32 %v65, %v207
    %v213 = vsub.s32 %v66, %v207
    %v214 = vsub.s32 %v67, %v207
    %v215 = vsub.s32 %v68, %v207
    %v216 = vsub.s32 %v69, %v207
    %v217 = vsub.s32 %v70, %v207
    %v218 = vsub.s32 %v71, %v207
    %v219 = vsub.s32 %v72, %v207
    %v220 = vsub.s32 %v73, %v207
    %v221 = vsub.s32 %v74, %v207
    %v222 = vsub.s32 %v75, %v207
    %v223 = vsub.s32 %v76, %v207
    %v224 = vsub.s32 %v77, %v207
    %v225 = vsub.s32 %v78, %v207
    %v226 = vsub.s32 %v79, %v207
    %v227 = vsub.s32 %v80, %v207
    %v228 = vsub.s32 %v81, %v207
    %v229 = vsub.s32 %v82, %v207
    %v230 = vsub.s32 %v83, %v207
    %v231 = vsub.s32 %v84, %v207
    %v232 = vsub.s32 %v85, %v207
    %v233 = vsub.s32 %v86, %v207
    %v234 = vsub.s32 %v87, %v207
    %v235 = vsub.s32 %v88, %v207
    %v236 = vsub.s32 %v89, %v207
    %v237 = vsub.s32 %v90, %v207
    %v238 = vsub.s32 %v91, %v207
    %v239 = vsub.s32 %v92, %v207
    %v240 = vsub.s32 %v93, %v207
    %v241 = vsub.s32 %v94, %v207
    %v242 = vsub.s32 %v95, %v207
    %v243 = vsub.s32 %v96, %v207
    %v244 = vsub.s32 %v97, %v207
    %v245 = vsub.s32 %v98, %v207
    %v246 = vsub.s32 %v99, %v207
    %v247 = vsub.s32 %v100, %v207
    %v248 = vsub.s32 %v101, %v207
    %v249 = vsub.s32 %v102, %v207
    %v250 = vsub.s32 %v103, %v207
    %v251 = vsub.s32 %v104, %v207
    %v252 = vsub.s32 %v105, %v207
    %v253 = vsub.s32 %v106, %v207
    %v254 = vsub.s32 %v107, %v207
    %v255 = vsub.s32 %v108, %v207
    %v256 = vsub.s32 %v109, %v207
    %v257 = vsub.s32 %v110, %v207
    %v258 = vsub.s32 %v111, %v207
    %v259 = vsub.s32 %v112, %v207
    %v260 = vsub.s32 %v113, %v207
    %v261 = vsub.s32 %v114, %v207
    %v262 = vsub.s32 %v115, %v207
    %v263 = vsub.s32 %v116, %v207
    %v264 = vsub.s32 %v117, %v207
    %v265 = vsub.s32 %v118, %v207
    %v266 = vsub.s32 %v119, %v207
    %v267 = vsub.s32 %v120, %v207
    %v268 = vsub.s32 %v121, %v207
    %v269 = vsub.s32 %v122, %v207
    %v270 = vsub.s32 %v123, %v207
    %v271 = vsub.s32 %v124, %v207
    %v272 = vsub.s32 %v125, %v207
    %v273 = vsub.s32 %v126, %v207
    %v274 = vsub.s32 %v127, %v207
    %v275 = vsub.s32 %v128, %v207
    %v276 = vsub.s32 %v129, %v207
    %v277 = vsub.s32 %v130, %v207
    %v278 = vsub.s32 %v131, %v207
    %v279 = vsub.s32 %v132, %v207
    %v280 = vsub.s32 %v133, %v207
    %v281 = vsub.s32 %v134, %v207
    %v282 = vsub.s32 %v135, %v207
    %v283 = vsub.s32 %v136, %v207
    %v284 = vsub.s32 %v137, %v207
    %v285 = vsub.s32 %v138, %v207
    %v286 = vsub.s32 %v139, %v207
    %v287 = vsub.s32 %v140, %v207
    %v288 = vsub.s32 %v141, %v207
    %v289 = vsub.s32 %v142, %v207
    %v290 = vsub.s32 %v143, %v207
    %v291 = vsub.s32 %v144, %v207
    %v292 = vsub.s32 %v145, %v207
    %v293 = vsub.s32 %v146, %v207
    %v294 = vsub.s32 %v147, %v207
    %v295 = vsub.s32 %v148, %v207
    %v296 = vsub.s32 %v149, %v207
    %v297 = vsub.s32 %v150, %v207
    %v298 = vsub.s32 %v151, %v207
    %v299 = vsub.s32 %v152, %v207
    %v300 = vsub.s32 %v153, %v207
    %v301 = vsub.s32 %v154, %v207
    %v302 = vsub.s32 %v155, %v207
    %v303 = vsub.s32 %v156, %v207
    %v304 = vsub.s32 %v157, %v207
    %v305 = vsub.s32 %v158, %v207
    %v306 = vsub.s32 %v159, %v207
    %v307 = vsub.s32 %v160, %v207
    %v308 = vsub.s32 %v161, %v207
    %v309 = vsub.s32 %v162, %v207
    %v310 = vsub.s32 %v163, %v207
    %v311 = vsub.s32 %v164, %v207
    %v312 = vsub.s32 %v165, %v207
    %v313 = vsub.s32 %v166, %v207
    %v314 = vsub.s32 %v167, %v207
    %v315 = vsub.s32 %v168, %v207
    %v316 = vsub.s32 %v169, %v207
    %v317 = vsub.s32 %v170, %v207
    %v318 = vsub.s32 %v171, %v207
    %v319 = vsub.s32 %v172, %v207
    %v320 = vsub.s32 %v173, %v207
    %v321 = vsub.s32 %v174, %v207
    %v322 = vsub.s32 %v175, %v207
    %v323 = vsub.s32 %v176, %v207
    %v324 = vsub.s32 %v177, %v207
    %v325 = vsub.s32 %v178, %v207
    %v326 = vsub.s32 %v179, %v207
    %v327 = vsub.s32 %v180, %v207
    %v328 = vsub.s32 %v181, %v207
    %v329 = vsub.s32 %v182, %v207
    %v330 = vsub.s32 %v183, %v207
    %v331 = vsub.s32 %v184, %v207
    %v332 = vsub.s32 %v185, %v207
    %v333 = vsub.s32 %v186, %v207
    %v334 = vsub.s32 %v187, %v207
    %v335 = vsub.s32 %v188, %v207
    %v336 = vsub.s32 %v189, %v207
    %v337 = vsub.s32 %v190, %v207
    %v338 = vsub.s32 %v191, %v207
    %v339 = vsub.s32 %v192, %v207
    %v340 = vsub.s32 %v193, %v207
    %v341 = vsub.s32 %v194, %v207
    %v342 = vsub.s32 %v195, %v207
    %v343 = vsub.s32 %v196, %v207
    %v344 = vsub.s32 %v197, %v207
    %v345 = vsub.s32 %v198, %v207
    %v346 = vsub.s32 %v199, %v207
    %v347 = vsub.s32 %v200, %v207
    %v348 = vsub.s32 %v201, %v207
    %v349 = vsub.s32 %v202, %v207
    %v350 = vsub.s32 %v203, %v207
    %v351 = vsub.s32 %v204, %v207
    %vm352 = vcmp.ge.s32.totalorder %v208, 0
    %vm353 = vcmp.ge.s32.totalorder %v209, 0
    %vm354 = vcmp.ge.s32.totalorder %v210, 0
    %vm355 = vcmp.ge.s32.totalorder %v211, 0
    %vm356 = vcmp.ge.s32.totalorder %v212, 0
    %vm357 = vcmp.ge.s32.totalorder %v213, 0
    %vm358 = vcmp.ge.s32.totalorder %v214, 0
    %vm359 = vcmp.ge.s32.totalorder %v215, 0
    %vm360 = vcmp.ge.s32.totalorder %v216, 0
    %vm361 = vcmp.ge.s32.totalorder %v217, 0
    %vm362 = vcmp.ge.s32.totalorder %v218, 0
    %vm363 = vcmp.ge.s32.totalorder %v219, 0
    %vm364 = vcmp.ge.s32.totalorder %v220, 0
    %vm365 = vcmp.ge.s32.totalorder %v221, 0
    %vm366 = vcmp.ge.s32.totalorder %v222, 0
    %vm367 = vcmp.ge.s32.totalorder %v223, 0
    %vm368 = vcmp.ge.s32.totalorder %v224, 0
    %vm369 = vcmp.ge.s32.totalorder %v225, 0
    %vm370 = vcmp.ge.s32.totalorder %v226, 0
    %vm371 = vcmp.ge.s32.totalorder %v227, 0
    %vm372 = vcmp.ge.s32.totalorder %v228, 0
    %vm373 = vcmp.ge.s32.totalorder %v229, 0
    %vm374 = vcmp.ge.s32.totalorder %v230, 0
    %vm375 = vcmp.ge.s32.totalorder %v231, 0
    %vm376 = vcmp.ge.s32.totalorder %v232, 0
    %vm377 = vcmp.ge.s32.totalorder %v233, 0
    %vm378 = vcmp.ge.s32.totalorder %v234, 0
    %vm379 = vcmp.ge.s32.totalorder %v235, 0
    %vm380 = vcmp.ge.s32.totalorder %v236, 0
    %vm381 = vcmp.ge.s32.totalorder %v237, 0
    %vm382 = vcmp.ge.s32.totalorder %v238, 0
    %vm383 = vcmp.ge.s32.totalorder %v239, 0
    %vm384 = vcmp.ge.s32.totalorder %v240, 0
    %vm385 = vcmp.ge.s32.totalorder %v241, 0
    %vm386 = vcmp.ge.s32.totalorder %v242, 0
    %vm387 = vcmp.ge.s32.totalorder %v243, 0
    %vm388 = vcmp.ge.s32.totalorder %v244, 0
    %vm389 = vcmp.ge.s32.totalorder %v245, 0
    %vm390 = vcmp.ge.s32.totalorder %v246, 0
    %vm391 = vcmp.ge.s32.totalorder %v247, 0
    %vm392 = vcmp.ge.s32.totalorder %v248, 0
    %vm393 = vcmp.ge.s32.totalorder %v249, 0
    %vm394 = vcmp.ge.s32.totalorder %v250, 0
    %vm395 = vcmp.ge.s32.totalorder %v251, 0
    %vm396 = vcmp.ge.s32.totalorder %v252, 0
    %vm397 = vcmp.ge.s32.totalorder %v253, 0
    %vm398 = vcmp.ge.s32.totalorder %v254, 0
    %vm399 = vcmp.ge.s32.totalorder %v255, 0
    %vm400 = vcmp.ge.s32.totalorder %v256, 0
    %vm401 = vcmp.ge.s32.totalorder %v257, 0
    %vm402 = vcmp.ge.s32.totalorder %v258, 0
    %vm403 = vcmp.ge.s32.totalorder %v259, 0
    %vm404 = vcmp.ge.s32.totalorder %v260, 0
    %vm405 = vcmp.ge.s32.totalorder %v261, 0
    %vm406 = vcmp.ge.s32.totalorder %v262, 0
    %vm407 = vcmp.ge.s32.totalorder %v263, 0
    %vm408 = vcmp.ge.s32.totalorder %v264, 0
    %vm409 = vcmp.ge.s32.totalorder %v265, 0
    %vm410 = vcmp.ge.s32.totalorder %v266, 0
    %vm411 = vcmp.ge.s32.totalorder %v267, 0
    %vm412 = vcmp.ge.s32.totalorder %v268, 0
    %vm413 = vcmp.ge.s32.totalorder %v269, 0
    %vm414 = vcmp.ge.s32.totalorder %v270, 0
    %vm415 = vcmp.ge.s32.totalorder %v271, 0
    %vm416 = vcmp.ge.s32.totalorder %v272, 0
    %vm417 = vcmp.ge.s32.totalorder %v273, 0
    %vm418 = vcmp.ge.s32.totalorder %v274, 0
    %vm419 = vcmp.ge.s32.totalorder %v275, 0
    %vm420 = vcmp.ge.s32.totalorder %v276, 0
    %vm421 = vcmp.ge.s32.totalorder %v277, 0
    %vm422 = vcmp.ge.s32.totalorder %v278, 0
    %vm423 = vcmp.ge.s32.totalorder %v279, 0
    %vm424 = vcmp.ge.s32.totalorder %v280, 0
    %vm425 = vcmp.ge.s32.totalorder %v281, 0
    %vm426 = vcmp.ge.s32.totalorder %v282, 0
    %vm427 = vcmp.ge.s32.totalorder %v283, 0
    %vm428 = vcmp.ge.s32.totalorder %v284, 0
    %vm429 = vcmp.ge.s32.totalorder %v285, 0
    %vm430 = vcmp.ge.s32.totalorder %v286, 0
    %vm431 = vcmp.ge.s32.totalorder %v287, 0
    %vm432 = vcmp.ge.s32.totalorder %v288, 0
    %vm433 = vcmp.ge.s32.totalorder %v289, 0
    %vm434 = vcmp.ge.s32.totalorder %v290, 0
    %vm435 = vcmp.ge.s32.totalorder %v291, 0
    %vm436 = vcmp.ge.s32.totalorder %v292, 0
    %vm437 = vcmp.ge.s32.totalorder %v293, 0
    %vm438 = vcmp.ge.s32.totalorder %v294, 0
    %vm439 = vcmp.ge.s32.totalorder %v295, 0
    %vm440 = vcmp.ge.s32.totalorder %v296, 0
    %vm441 = vcmp.ge.s32.totalorder %v297, 0
    %vm442 = vcmp.ge.s32.totalorder %v298, 0
    %vm443 = vcmp.ge.s32.totalorder %v299, 0
    %vm444 = vcmp.ge.s32.totalorder %v300, 0
    %vm445 = vcmp.ge.s32.totalorder %v301, 0
    %vm446 = vcmp.ge.s32.totalorder %v302, 0
    %vm447 = vcmp.ge.s32.totalorder %v303, 0
    %vm448 = vcmp.ge.s32.totalorder %v304, 0
    %vm449 = vcmp.ge.s32.totalorder %v305, 0
    %vm450 = vcmp.ge.s32.totalorder %v306, 0
    %vm451 = vcmp.ge.s32.totalorder %v307, 0
    %vm452 = vcmp.ge.s32.totalorder %v308, 0
    %vm453 = vcmp.ge.s32.totalorder %v309, 0
    %vm454 = vcmp.ge.s32.totalorder %v310, 0
    %vm455 = vcmp.ge.s32.totalorder %v311, 0
    %vm456 = vcmp.ge.s32.totalorder %v312, 0
    %vm457 = vcmp.ge.s32.totalorder %v313, 0
    %vm458 = vcmp.ge.s32.totalorder %v314, 0
    %vm459 = vcmp.ge.s32.totalorder %v315, 0
    %vm460 = vcmp.ge.s32.totalorder %v316, 0
    %vm461 = vcmp.ge.s32.totalorder %v317, 0
    %vm462 = vcmp.ge.s32.totalorder %v318, 0
    %vm463 = vcmp.ge.s32.totalorder %v319, 0
    %vm464 = vcmp.ge.s32.totalorder %v320, 0
    %vm465 = vcmp.ge.s32.totalorder %v321, 0
    %vm466 = vcmp.ge.s32.totalorder %v322, 0
    %vm467 = vcmp.ge.s32.totalorder %v323, 0
    %vm468 = vcmp.ge.s32.totalorder %v324, 0
    %vm469 = vcmp.ge.s32.totalorder %v325, 0
    %vm470 = vcmp.ge.s32.totalorder %v326, 0
    %vm471 = vcmp.ge.s32.totalorder %v327, 0
    %vm472 = vcmp.ge.s32.totalorder %v328, 0
    %vm473 = vcmp.ge.s32.totalorder %v329, 0
    %vm474 = vcmp.ge.s32.totalorder %v330, 0
    %vm475 = vcmp.ge.s32.totalorder %v331, 0
    %vm476 = vcmp.ge.s32.totalorder %v332, 0
    %vm477 = vcmp.ge.s32.totalorder %v333, 0
    %vm478 = vcmp.ge.s32.totalorder %v334, 0
    %vm479 = vcmp.ge.s32.totalorder %v335, 0
    %vm480 = vcmp.ge.s32.totalorder %v336, 0
    %vm481 = vcmp.ge.s32.totalorder %v337, 0
    %vm482 = vcmp.ge.s32.totalorder %v338, 0
    %vm483 = vcmp.ge.s32.totalorder %v339, 0
    %vm484 = vcmp.ge.s32.totalorder %v340, 0
    %vm485 = vcmp.ge.s32.totalorder %v341, 0
    %vm486 = vcmp.ge.s32.totalorder %v342, 0
    %vm487 = vcmp.ge.s32.totalorder %v343, 0
    %vm488 = vcmp.ge.s32.totalorder %v344, 0
    %vm489 = vcmp.ge.s32.totalorder %v345, 0
    %vm490 = vcmp.ge.s32.totalorder %v346, 0
    %vm491 = vcmp.ge.s32.totalorder %v347, 0
    %vm492 = vcmp.ge.s32.totalorder %v348, 0
    %vm493 = vcmp.ge.s32.totalorder %v349, 0
    %vm494 = vcmp.ge.s32.totalorder %v350, 0
    %vm495 = vcmp.ge.s32.totalorder %v351, 0
    %vm496 = vcmp.lt.s32.totalorder %v208, 36
    %vm497 = vcmp.lt.s32.totalorder %v209, 36
    %vm498 = vcmp.lt.s32.totalorder %v210, 36
    %vm499 = vcmp.lt.s32.totalorder %v211, 36
    %vm500 = vcmp.lt.s32.totalorder %v212, 36
    %vm501 = vcmp.lt.s32.totalorder %v213, 36
    %vm502 = vcmp.lt.s32.totalorder %v214, 36
    %vm503 = vcmp.lt.s32.totalorder %v215, 36
    %vm504 = vcmp.lt.s32.totalorder %v216, 36
    %vm505 = vcmp.lt.s32.totalorder %v217, 36
    %vm506 = vcmp.lt.s32.totalorder %v218, 36
    %vm507 = vcmp.lt.s32.totalorder %v219, 36
    %vm508 = vcmp.lt.s32.totalorder %v220, 36
    %vm509 = vcmp.lt.s32.totalorder %v221, 36
    %vm510 = vcmp.lt.s32.totalorder %v222, 36
    %vm511 = vcmp.lt.s32.totalorder %v223, 36
    %vm512 = vcmp.lt.s32.totalorder %v224, 36
    %vm513 = vcmp.lt.s32.totalorder %v225, 36
    %vm514 = vcmp.lt.s32.totalorder %v226, 36
    %vm515 = vcmp.lt.s32.totalorder %v227, 36
    %vm516 = vcmp.lt.s32.totalorder %v228, 36
    %vm517 = vcmp.lt.s32.totalorder %v229, 36
    %vm518 = vcmp.lt.s32.totalorder %v230, 36
    %vm519 = vcmp.lt.s32.totalorder %v231, 36
    %vm520 = vcmp.lt.s32.totalorder %v232, 36
    %vm521 = vcmp.lt.s32.totalorder %v233, 36
    %vm522 = vcmp.lt.s32.totalorder %v234, 36
    %vm523 = vcmp.lt.s32.totalorder %v235, 36
    %vm524 = vcmp.lt.s32.totalorder %v236, 36
    %vm525 = vcmp.lt.s32.totalorder %v237, 36
    %vm526 = vcmp.lt.s32.totalorder %v238, 36
    %vm527 = vcmp.lt.s32.totalorder %v239, 36
    %vm528 = vcmp.lt.s32.totalorder %v240, 36
    %vm529 = vcmp.lt.s32.totalorder %v241, 36
    %vm530 = vcmp.lt.s32.totalorder %v242, 36
    %vm531 = vcmp.lt.s32.totalorder %v243, 36
    %vm532 = vcmp.lt.s32.totalorder %v244, 36
    %vm533 = vcmp.lt.s32.totalorder %v245, 36
    %vm534 = vcmp.lt.s32.totalorder %v246, 36
    %vm535 = vcmp.lt.s32.totalorder %v247, 36
    %vm536 = vcmp.lt.s32.totalorder %v248, 36
    %vm537 = vcmp.lt.s32.totalorder %v249, 36
    %vm538 = vcmp.lt.s32.totalorder %v250, 36
    %vm539 = vcmp.lt.s32.totalorder %v251, 36
    %vm540 = vcmp.lt.s32.totalorder %v252, 36
    %vm541 = vcmp.lt.s32.totalorder %v253, 36
    %vm542 = vcmp.lt.s32.totalorder %v254, 36
    %vm543 = vcmp.lt.s32.totalorder %v255, 36
    %vm544 = vcmp.lt.s32.totalorder %v256, 36
    %vm545 = vcmp.lt.s32.totalorder %v257, 36
    %vm546 = vcmp.lt.s32.totalorder %v258, 36
    %vm547 = vcmp.lt.s32.totalorder %v259, 36
    %vm548 = vcmp.lt.s32.totalorder %v260, 36
    %vm549 = vcmp.lt.s32.totalorder %v261, 36
    %vm550 = vcmp.lt.s32.totalorder %v262, 36
    %vm551 = vcmp.lt.s32.totalorder %v263, 36
    %vm552 = vcmp.lt.s32.totalorder %v264, 36
    %vm553 = vcmp.lt.s32.totalorder %v265, 36
    %vm554 = vcmp.lt.s32.totalorder %v266, 36
    %vm555 = vcmp.lt.s32.totalorder %v267, 36
    %vm556 = vcmp.lt.s32.totalorder %v268, 36
    %vm557 = vcmp.lt.s32.totalorder %v269, 36
    %vm558 = vcmp.lt.s32.totalorder %v270, 36
    %vm559 = vcmp.lt.s32.totalorder %v271, 36
    %vm560 = vcmp.lt.s32.totalorder %v272, 36
    %vm561 = vcmp.lt.s32.totalorder %v273, 36
    %vm562 = vcmp.lt.s32.totalorder %v274, 36
    %vm563 = vcmp.lt.s32.totalorder %v275, 36
    %vm564 = vcmp.lt.s32.totalorder %v276, 36
    %vm565 = vcmp.lt.s32.totalorder %v277, 36
    %vm566 = vcmp.lt.s32.totalorder %v278, 36
    %vm567 = vcmp.lt.s32.totalorder %v279, 36
    %vm568 = vcmp.lt.s32.totalorder %v280, 36
    %vm569 = vcmp.lt.s32.totalorder %v281, 36
    %vm570 = vcmp.lt.s32.totalorder %v282, 36
    %vm571 = vcmp.lt.s32.totalorder %v283, 36
    %vm572 = vcmp.lt.s32.totalorder %v284, 36
    %vm573 = vcmp.lt.s32.totalorder %v285, 36
    %vm574 = vcmp.lt.s32.totalorder %v286, 36
    %vm575 = vcmp.lt.s32.totalorder %v287, 36
    %vm576 = vcmp.lt.s32.totalorder %v288, 36
    %vm577 = vcmp.lt.s32.totalorder %v289, 36
    %vm578 = vcmp.lt.s32.totalorder %v290, 36
    %vm579 = vcmp.lt.s32.totalorder %v291, 36
    %vm580 = vcmp.lt.s32.totalorder %v292, 36
    %vm581 = vcmp.lt.s32.totalorder %v293, 36
    %vm582 = vcmp.lt.s32.totalorder %v294, 36
    %vm583 = vcmp.lt.s32.totalorder %v295, 36
    %vm584 = vcmp.lt.s32.totalorder %v296, 36
    %vm585 = vcmp.lt.s32.totalorder %v297, 36
    %vm586 = vcmp.lt.s32.totalorder %v298, 36
    %vm587 = vcmp.lt.s32.totalorder %v299, 36
    %vm588 = vcmp.lt.s32.totalorder %v300, 36
    %vm589 = vcmp.lt.s32.totalorder %v301, 36
    %vm590 = vcmp.lt.s32.totalorder %v302, 36
    %vm591 = vcmp.lt.s32.totalorder %v303, 36
    %vm592 = vcmp.lt.s32.totalorder %v304, 36
    %vm593 = vcmp.lt.s32.totalorder %v305, 36
    %vm594 = vcmp.lt.s32.totalorder %v306, 36
    %vm595 = vcmp.lt.s32.totalorder %v307, 36
    %vm596 = vcmp.lt.s32.totalorder %v308, 36
    %vm597 = vcmp.lt.s32.totalorder %v309, 36
    %vm598 = vcmp.lt.s32.totalorder %v310, 36
    %vm599 = vcmp.lt.s32.totalorder %v311, 36
    %vm600 = vcmp.lt.s32.totalorder %v312, 36
    %vm601 = vcmp.lt.s32.totalorder %v313, 36
    %vm602 = vcmp.lt.s32.totalorder %v314, 36
    %vm603 = vcmp.lt.s32.totalorder %v315, 36
    %vm604 = vcmp.lt.s32.totalorder %v316, 36
    %vm605 = vcmp.lt.s32.totalorder %v317, 36
    %vm606 = vcmp.lt.s32.totalorder %v318, 36
    %vm607 = vcmp.lt.s32.totalorder %v319, 36
    %vm608 = vcmp.lt.s32.totalorder %v320, 36
    %vm609 = vcmp.lt.s32.totalorder %v321, 36
    %vm610 = vcmp.lt.s32.totalorder %v322, 36
    %vm611 = vcmp.lt.s32.totalorder %v323, 36
    %vm612 = vcmp.lt.s32.totalorder %v324, 36
    %vm613 = vcmp.lt.s32.totalorder %v325, 36
    %vm614 = vcmp.lt.s32.totalorder %v326, 36
    %vm615 = vcmp.lt.s32.totalorder %v327, 36
    %vm616 = vcmp.lt.s32.totalorder %v328, 36
    %vm617 = vcmp.lt.s32.totalorder %v329, 36
    %vm618 = vcmp.lt.s32.totalorder %v330, 36
    %vm619 = vcmp.lt.s32.totalorder %v331, 36
    %vm620 = vcmp.lt.s32.totalorder %v332, 36
    %vm621 = vcmp.lt.s32.totalorder %v333, 36
    %vm622 = vcmp.lt.s32.totalorder %v334, 36
    %vm623 = vcmp.lt.s32.totalorder %v335, 36
    %vm624 = vcmp.lt.s32.totalorder %v336, 36
    %vm625 = vcmp.lt.s32.totalorder %v337, 36
    %vm626 = vcmp.lt.s32.totalorder %v338, 36
    %vm627 = vcmp.lt.s32.totalorder %v339, 36
    %vm628 = vcmp.lt.s32.totalorder %v340, 36
    %vm629 = vcmp.lt.s32.totalorder %v341, 36
    %vm630 = vcmp.lt.s32.totalorder %v342, 36
    %vm631 = vcmp.lt.s32.totalorder %v343, 36
    %vm632 = vcmp.lt.s32.totalorder %v344, 36
    %vm633 = vcmp.lt.s32.totalorder %v345, 36
    %vm634 = vcmp.lt.s32.totalorder %v346, 36
    %vm635 = vcmp.lt.s32.totalorder %v347, 36
    %vm636 = vcmp.lt.s32.totalorder %v348, 36
    %vm637 = vcmp.lt.s32.totalorder %v349, 36
    %vm638 = vcmp.lt.s32.totalorder %v350, 36
    %vm639 = vcmp.lt.s32.totalorder %v351, 36
    %vm640 = vmand %vm352, %vm496
    %vm641 = vmand %vm353, %vm497
    %vm642 = vmand %vm354, %vm498
    %vm643 = vmand %vm355, %vm499
    %vm644 = vmand %vm356, %vm500
    %vm645 = vmand %vm357, %vm501
    %vm646 = vmand %vm358, %vm502
    %vm647 = vmand %vm359, %vm503
    %vm648 = vmand %vm360, %vm504
    %vm649 = vmand %vm361, %vm505
    %vm650 = vmand %vm362, %vm506
    %vm651 = vmand %vm363, %vm507
    %vm652 = vmand %vm364, %vm508
    %vm653 = vmand %vm365, %vm509
    %vm654 = vmand %vm366, %vm510
    %vm655 = vmand %vm367, %vm511
    %vm656 = vmand %vm368, %vm512
    %vm657 = vmand %vm369, %vm513
    %vm658 = vmand %vm370, %vm514
    %vm659 = vmand %vm371, %vm515
    %vm660 = vmand %vm372, %vm516
    %vm661 = vmand %vm373, %vm517
    %vm662 = vmand %vm374, %vm518
    %vm663 = vmand %vm375, %vm519
    %vm664 = vmand %vm376, %vm520
    %vm665 = vmand %vm377, %vm521
    %vm666 = vmand %vm378, %vm522
    %vm667 = vmand %vm379, %vm523
    %vm668 = vmand %vm380, %vm524
    %vm669 = vmand %vm381, %vm525
    %vm670 = vmand %vm382, %vm526
    %vm671 = vmand %vm383, %vm527
    %vm672 = vmand %vm384, %vm528
    %vm673 = vmand %vm385, %vm529
    %vm674 = vmand %vm386, %vm530
    %vm675 = vmand %vm387, %vm531
    %vm676 = vmand %vm388, %vm532
    %vm677 = vmand %vm389, %vm533
    %vm678 = vmand %vm390, %vm534
    %vm679 = vmand %vm391, %vm535
    %vm680 = vmand %vm392, %vm536
    %vm681 = vmand %vm393, %vm537
    %vm682 = vmand %vm394, %vm538
    %vm683 = vmand %vm395, %vm539
    %vm684 = vmand %vm396, %vm540
    %vm685 = vmand %vm397, %vm541
    %vm686 = vmand %vm398, %vm542
    %vm687 = vmand %vm399, %vm543
    %vm688 = vmand %vm400, %vm544
    %vm689 = vmand %vm401, %vm545
    %vm690 = vmand %vm402, %vm546
    %vm691 = vmand %vm403, %vm547
    %vm692 = vmand %vm404, %vm548
    %vm693 = vmand %vm405, %vm549
    %vm694 = vmand %vm406, %vm550
    %vm695 = vmand %vm407, %vm551
    %vm696 = vmand %vm408, %vm552
    %vm697 = vmand %vm409, %vm553
    %vm698 = vmand %vm410, %vm554
    %vm699 = vmand %vm411, %vm555
    %vm700 = vmand %vm412, %vm556
    %vm701 = vmand %vm413, %vm557
    %vm702 = vmand %vm414, %vm558
    %vm703 = vmand %vm415, %vm559
    %vm704 = vmand %vm416, %vm560
    %vm705 = vmand %vm417, %vm561
    %vm706 = vmand %vm418, %vm562
    %vm707 = vmand %vm419, %vm563
    %vm708 = vmand %vm420, %vm564
    %vm709 = vmand %vm421, %vm565
    %vm710 = vmand %vm422, %vm566
    %vm711 = vmand %vm423, %vm567
    %vm712 = vmand %vm424, %vm568
    %vm713 = vmand %vm425, %vm569
    %vm714 = vmand %vm426, %vm570
    %vm715 = vmand %vm427, %vm571
    %vm716 = vmand %vm428, %vm572
    %vm717 = vmand %vm429, %vm573
    %vm718 = vmand %vm430, %vm574
    %vm719 = vmand %vm431, %vm575
    %vm720 = vmand %vm432, %vm576
    %vm721 = vmand %vm433, %vm577
    %vm722 = vmand %vm434, %vm578
    %vm723 = vmand %vm435, %vm579
    %vm724 = vmand %vm436, %vm580
    %vm725 = vmand %vm437, %vm581
    %vm726 = vmand %vm438, %vm582
    %vm727 = vmand %vm439, %vm583
    %vm728 = vmand %vm440, %vm584
    %vm729 = vmand %vm441, %vm585
    %vm730 = vmand %vm442, %vm586
    %vm731 = vmand %vm443, %vm587
    %vm732 = vmand %vm444, %vm588
    %vm733 = vmand %vm445, %vm589
    %vm734 = vmand %vm446, %vm590
    %vm735 = vmand %vm447, %vm591
    %vm736 = vmand %vm448, %vm592
    %vm737 = vmand %vm449, %vm593
    %vm738 = vmand %vm450, %vm594
    %vm739 = vmand %vm451, %vm595
    %vm740 = vmand %vm452, %vm596
    %vm741 = vmand %vm453, %vm597
    %vm742 = vmand %vm454, %vm598
    %vm743 = vmand %vm455, %vm599
    %vm744 = vmand %vm456, %vm600
    %vm745 = vmand %vm457, %vm601
    %vm746 = vmand %vm458, %vm602
    %vm747 = vmand %vm459, %vm603
    %vm748 = vmand %vm460, %vm604
    %vm749 = vmand %vm461, %vm605
    %vm750 = vmand %vm462, %vm606
    %vm751 = vmand %vm463, %vm607
    %vm752 = vmand %vm464, %vm608
    %vm753 = vmand %vm465, %vm609
    %vm754 = vmand %vm466, %vm610
    %vm755 = vmand %vm467, %vm611
    %vm756 = vmand %vm468, %vm612
    %vm757 = vmand %vm469, %vm613
    %vm758 = vmand %vm470, %vm614
    %vm759 = vmand %vm471, %vm615
    %vm760 = vmand %vm472, %vm616
    %vm761 = vmand %vm473, %vm617
    %vm762 = vmand %vm474, %vm618
    %vm763 = vmand %vm475, %vm619
    %vm764 = vmand %vm476, %vm620
    %vm765 = vmand %vm477, %vm621
    %vm766 = vmand %vm478, %vm622
    %vm767 = vmand %vm479, %vm623
    %vm768 = vmand %vm480, %vm624
    %vm769 = vmand %vm481, %vm625
    %vm770 = vmand %vm482, %vm626
    %vm771 = vmand %vm483, %vm627
    %vm772 = vmand %vm484, %vm628
    %vm773 = vmand %vm485, %vm629
    %vm774 = vmand %vm486, %vm630
    %vm775 = vmand %vm487, %vm631
    %vm776 = vmand %vm488, %vm632
    %vm777 = vmand %vm489, %vm633
    %vm778 = vmand %vm490, %vm634
    %vm779 = vmand %vm491, %vm635
    %vm780 = vmand %vm492, %vm636
    %vm781 = vmand %vm493, %vm637
    %vm782 = vmand %vm494, %vm638
    %vm783 = vmand %vm495, %vm639
    %v784 = vsel %vm640, 1.0, 0.0
    %v785 = vsel %vm641, 1.0, 0.0
    %v786 = vsel %vm642, 1.0, 0.0
    %v787 = vsel %vm643, 1.0, 0.0
    %v788 = vsel %vm644, 1.0, 0.0
    %v789 = vsel %vm645, 1.0, 0.0
    %v790 = vsel %vm646, 1.0, 0.0
    %v791 = vsel %vm647, 1.0, 0.0
    %v792 = vsel %vm648, 1.0, 0.0
    %v793 = vsel %vm649, 1.0, 0.0
    %v794 = vsel %vm650, 1.0, 0.0
    %v795 = vsel %vm651, 1.0, 0.0
    %v796 = vsel %vm652, 1.0, 0.0
    %v797 = vsel %vm653, 1.0, 0.0
    %v798 = vsel %vm654, 1.0, 0.0
    %v799 = vsel %vm655, 1.0, 0.0
    %v800 = vsel %vm656, 1.0, 0.0
    %v801 = vsel %vm657, 1.0, 0.0
    %v802 = vsel %vm658, 1.0, 0.0
    %v803 = vsel %vm659, 1.0, 0.0
    %v804 = vsel %vm660, 1.0, 0.0
    %v805 = vsel %vm661, 1.0, 0.0
    %v806 = vsel %vm662, 1.0, 0.0
    %v807 = vsel %vm663, 1.0, 0.0
    %v808 = vsel %vm664, 1.0, 0.0
    %v809 = vsel %vm665, 1.0, 0.0
    %v810 = vsel %vm666, 1.0, 0.0
    %v811 = vsel %vm667, 1.0, 0.0
    %v812 = vsel %vm668, 1.0, 0.0
    %v813 = vsel %vm669, 1.0, 0.0
    %v814 = vsel %vm670, 1.0, 0.0
    %v815 = vsel %vm671, 1.0, 0.0
    %v816 = vsel %vm672, 1.0, 0.0
    %v817 = vsel %vm673, 1.0, 0.0
    %v818 = vsel %vm674, 1.0, 0.0
    %v819 = vsel %vm675, 1.0, 0.0
    %v820 = vsel %vm676, 1.0, 0.0
    %v821 = vsel %vm677, 1.0, 0.0
    %v822 = vsel %vm678, 1.0, 0.0
    %v823 = vsel %vm679, 1.0, 0.0
    %v824 = vsel %vm680, 1.0, 0.0
    %v825 = vsel %vm681, 1.0, 0.0
    %v826 = vsel %vm682, 1.0, 0.0
    %v827 = vsel %vm683, 1.0, 0.0
    %v828 = vsel %vm684, 1.0, 0.0
    %v829 = vsel %vm685, 1.0, 0.0
    %v830 = vsel %vm686, 1.0, 0.0
    %v831 = vsel %vm687, 1.0, 0.0
    %v832 = vsel %vm688, 1.0, 0.0
    %v833 = vsel %vm689, 1.0, 0.0
    %v834 = vsel %vm690, 1.0, 0.0
    %v835 = vsel %vm691, 1.0, 0.0
    %v836 = vsel %vm692, 1.0, 0.0
    %v837 = vsel %vm693, 1.0, 0.0
    %v838 = vsel %vm694, 1.0, 0.0
    %v839 = vsel %vm695, 1.0, 0.0
    %v840 = vsel %vm696, 1.0, 0.0
    %v841 = vsel %vm697, 1.0, 0.0
    %v842 = vsel %vm698, 1.0, 0.0
    %v843 = vsel %vm699, 1.0, 0.0
    %v844 = vsel %vm700, 1.0, 0.0
    %v845 = vsel %vm701, 1.0, 0.0
    %v846 = vsel %vm702, 1.0, 0.0
    %v847 = vsel %vm703, 1.0, 0.0
    %v848 = vsel %vm704, 1.0, 0.0
    %v849 = vsel %vm705, 1.0, 0.0
    %v850 = vsel %vm706, 1.0, 0.0
    %v851 = vsel %vm707, 1.0, 0.0
    %v852 = vsel %vm708, 1.0, 0.0
    %v853 = vsel %vm709, 1.0, 0.0
    %v854 = vsel %vm710, 1.0, 0.0
    %v855 = vsel %vm711, 1.0, 0.0
    %v856 = vsel %vm712, 1.0, 0.0
    %v857 = vsel %vm713, 1.0, 0.0
    %v858 = vsel %vm714, 1.0, 0.0
    %v859 = vsel %vm715, 1.0, 0.0
    %v860 = vsel %vm716, 1.0, 0.0
    %v861 = vsel %vm717, 1.0, 0.0
    %v862 = vsel %vm718, 1.0, 0.0
    %v863 = vsel %vm719, 1.0, 0.0
    %v864 = vsel %vm720, 1.0, 0.0
    %v865 = vsel %vm721, 1.0, 0.0
    %v866 = vsel %vm722, 1.0, 0.0
    %v867 = vsel %vm723, 1.0, 0.0
    %v868 = vsel %vm724, 1.0, 0.0
    %v869 = vsel %vm725, 1.0, 0.0
    %v870 = vsel %vm726, 1.0, 0.0
    %v871 = vsel %vm727, 1.0, 0.0
    %v872 = vsel %vm728, 1.0, 0.0
    %v873 = vsel %vm729, 1.0, 0.0
    %v874 = vsel %vm730, 1.0, 0.0
    %v875 = vsel %vm731, 1.0, 0.0
    %v876 = vsel %vm732, 1.0, 0.0
    %v877 = vsel %vm733, 1.0, 0.0
    %v878 = vsel %vm734, 1.0, 0.0
    %v879 = vsel %vm735, 1.0, 0.0
    %v880 = vsel %vm736, 1.0, 0.0
    %v881 = vsel %vm737, 1.0, 0.0
    %v882 = vsel %vm738, 1.0, 0.0
    %v883 = vsel %vm739, 1.0, 0.0
    %v884 = vsel %vm740, 1.0, 0.0
    %v885 = vsel %vm741, 1.0, 0.0
    %v886 = vsel %vm742, 1.0, 0.0
    %v887 = vsel %vm743, 1.0, 0.0
    %v888 = vsel %vm744, 1.0, 0.0
    %v889 = vsel %vm745, 1.0, 0.0
    %v890 = vsel %vm746, 1.0, 0.0
    %v891 = vsel %vm747, 1.0, 0.0
    %v892 = vsel %vm748, 1.0, 0.0
    %v893 = vsel %vm749, 1.0, 0.0
    %v894 = vsel %vm750, 1.0, 0.0
    %v895 = vsel %vm751, 1.0, 0.0
    %v896 = vsel %vm752, 1.0, 0.0
    %v897 = vsel %vm753, 1.0, 0.0
    %v898 = vsel %vm754, 1.0, 0.0
    %v899 = vsel %vm755, 1.0, 0.0
    %v900 = vsel %vm756, 1.0, 0.0
    %v901 = vsel %vm757, 1.0, 0.0
    %v902 = vsel %vm758, 1.0, 0.0
    %v903 = vsel %vm759, 1.0, 0.0
    %v904 = vsel %vm760, 1.0, 0.0
    %v905 = vsel %vm761, 1.0, 0.0
    %v906 = vsel %vm762, 1.0, 0.0
    %v907 = vsel %vm763, 1.0, 0.0
    %v908 = vsel %vm764, 1.0, 0.0
    %v909 = vsel %vm765, 1.0, 0.0
    %v910 = vsel %vm766, 1.0, 0.0
    %v911 = vsel %vm767, 1.0, 0.0
    %v912 = vsel %vm768, 1.0, 0.0
    %v913 = vsel %vm769, 1.0, 0.0
    %v914 = vsel %vm770, 1.0, 0.0
    %v915 = vsel %vm771, 1.0, 0.0
    %v916 = vsel %vm772, 1.0, 0.0
    %v917 = vsel %vm773, 1.0, 0.0
    %v918 = vsel %vm774, 1.0, 0.0
    %v919 = vsel %vm775, 1.0, 0.0
    %v920 = vsel %vm776, 1.0, 0.0
    %v921 = vsel %vm777, 1.0, 0.0
    %v922 = vsel %vm778, 1.0, 0.0
    %v923 = vsel %vm779, 1.0, 0.0
    %v924 = vsel %vm780, 1.0, 0.0
    %v925 = vsel %vm781, 1.0, 0.0
    %v926 = vsel %vm782, 1.0, 0.0
    %v927 = vsel %vm783, 1.0, 0.0
    %933 = vst [vmem:[#allocation1] ss:$2 sm:$0xff] %v50
    %s934 = scalar_lea.vmem [#allocation1], 16
    %935 = vst [vmem:[%s934] ss:$2 sm:$0xff] %v51
    %s936 = scalar_lea.vmem [#allocation1], 32
    %937 = vst [vmem:[%s936] ss:$2 sm:$0xff] %v52
    %s938 = scalar_lea.vmem [#allocation1], 48
    %939 = vst [vmem:[%s938] ss:$2 sm:$0xff] %v53
    %v940 = vld.sshfl [vmem:[#allocation1] sm:$0xff pattern:$0x75316420]
    %v941 = vld.sshfl [vmem:[#allocation1 + $0x8] sm:$0xff pattern:$0x75316420]
    %v942 = vld.sshfl [vmem:[#allocation1 + $0x10] sm:$0xff pattern:$0x75316420]
    %v943 = vld.sshfl [vmem:[#allocation1 + $0x18] sm:$0xff pattern:$0x75316420]
    %v944 = vld.sshfl [vmem:[#allocation1 + $0x20] sm:$0xff pattern:$0x75316420]
    %v945 = vld.sshfl [vmem:[#allocation1 + $0x28] sm:$0xff pattern:$0x75316420]
    %v946 = vld.sshfl [vmem:[#allocation1 + $0x30] sm:$0xff pattern:$0x75316420]
    %v947 = vld.sshfl [vmem:[#allocation1 + $0x38] sm:$0xff pattern:$0x75316420]
    %948 = vst [vmem:[#allocation1] ss:$2 sm:$0xff] %v54
    %v949 = vld.sshfl [vmem:[#allocation1] sm:$0xff pattern:$0x75316420]
    %959 = vmatpush.msra.mxu0 %v799
    %960 = vmatpush.msra.mxu0 %v798
    %961 = vmatpush.msra.mxu0 %v797
    %962 = vmatpush.msra.mxu0 %v796
    %963 = vmatpush.msra.mxu0 %v795
    %964 = vmatpush.msra.mxu0 %v794
    %965 = vmatpush.msra.mxu0 %v793
    %966 = vmatpush.msra.mxu0 %v792
    %967 = vmatpush.msra.mxu0 %v791
    %968 = vmatpush.msra.mxu0 %v790
    %969 = vmatpush.msra.mxu0 %v789
    %970 = vmatpush.msra.mxu0 %v788
    %971 = vmatpush.msra.mxu0 %v787
    %972 = vmatpush.msra.mxu0 %v786
    %973 = vmatpush.msra.mxu0 %v785
    %974 = vmatpush.msra.mxu0 %v784
    %975 = vmatmul.f32.gmra.mxu0 %v940
    %v976 = vpop.f32.mrf.mxu0
    %v977 = vadd.f32 0.0, %v976
    %978 = vdwg.mxu0
    %979 = vmatpush.msra.mxu0 %v815
    %980 = vmatpush.msra.mxu0 %v814
    %981 = vmatpush.msra.mxu0 %v813
    %982 = vmatpush.msra.mxu0 %v812
    %983 = vmatpush.msra.mxu0 %v811
    %984 = vmatpush.msra.mxu0 %v810
    %985 = vmatpush.msra.mxu0 %v809
    %986 = vmatpush.msra.mxu0 %v808
    %987 = vmatpush.msra.mxu0 %v807
    %988 = vmatpush.msra.mxu0 %v806
    %989 = vmatpush.msra.mxu0 %v805
    %990 = vmatpush.msra.mxu0 %v804
    %991 = vmatpush.msra.mxu0 %v803
    %992 = vmatpush.msra.mxu0 %v802
    %993 = vmatpush.msra.mxu0 %v801
    %994 = vmatpush.msra.mxu0 %v800
    %995 = vmatmul.f32.gmra.mxu0 %v941
    %v996 = vpop.f32.mrf.mxu0
    %v997 = vadd.f32 %v977, %v996
    %998 = vdwg.mxu0
    %999 = vmatpush.msra.mxu0 %v831
    %1000 = vmatpush.msra.mxu0 %v830
    %1001 = vmatpush.msra.mxu0 %v829
    %1002 = vmatpush.msra.mxu0 %v828
    %1003 = vmatpush.msra.mxu0 %v827
    %1004 = vmatpush.msra.mxu0 %v826
    %1005 = vmatpush.msra.mxu0 %v825
    %1006 = vmatpush.msra.mxu0 %v824
    %1007 = vmatpush.msra.mxu0 %v823
    %1008 = vmatpush.msra.mxu0 %v822
    %1009 = vmatpush.msra.mxu0 %v821
    %1010 = vmatpush.msra.mxu0 %v820
    %1011 = vmatpush.msra.mxu0 %v819
    %1012 = vmatpush.msra.mxu0 %v818
    %1013 = vmatpush.msra.mxu0 %v817
    %1014 = vmatpush.msra.mxu0 %v816
    %1015 = vmatmul.f32.gmra.mxu0 %v942
    %v1016 = vpop.f32.mrf.mxu0
    %v1017 = vadd.f32 %v997, %v1016
    %1018 = vdwg.mxu0
    %1019 = vmatpush.msra.mxu0 %v847
    %1020 = vmatpush.msra.mxu0 %v846
    %1021 = vmatpush.msra.mxu0 %v845
    %1022 = vmatpush.msra.mxu0 %v844
    %1023 = vmatpush.msra.mxu0 %v843
    %1024 = vmatpush.msra.mxu0 %v842
    %1025 = vmatpush.msra.mxu0 %v841
    %1026 = vmatpush.msra.mxu0 %v840
    %1027 = vmatpush.msra.mxu0 %v839
    %1028 = vmatpush.msra.mxu0 %v838
    %1029 = vmatpush.msra.mxu0 %v837
    %1030 = vmatpush.msra.mxu0 %v836
    %1031 = vmatpush.msra.mxu0 %v835
    %1032 = vmatpush.msra.mxu0 %v834
    %1033 = vmatpush.msra.mxu0 %v833
    %1034 = vmatpush.msra.mxu0 %v832
    %1035 = vmatmul.f32.gmra.mxu0 %v943
    %v1036 = vpop.f32.mrf.mxu0
    %v1037 = vadd.f32 %v1017, %v1036
    %1038 = vdwg.mxu0
    %1039 = vmatpush.msra.mxu0 %v863
    %1040 = vmatpush.msra.mxu0 %v862
    %1041 = vmatpush.msra.mxu0 %v861
    %1042 = vmatpush.msra.mxu0 %v860
    %1043 = vmatpush.msra.mxu0 %v859
    %1044 = vmatpush.msra.mxu0 %v858
    %1045 = vmatpush.msra.mxu0 %v857
    %1046 = vmatpush.msra.mxu0 %v856
    %1047 = vmatpush.msra.mxu0 %v855
    %1048 = vmatpush.msra.mxu0 %v854
    %1049 = vmatpush.msra.mxu0 %v853
    %1050 = vmatpush.msra.mxu0 %v852
    %1051 = vmatpush.msra.mxu0 %v851
    %1052 = vmatpush.msra.mxu0 %v850
    %1053 = vmatpush.msra.mxu0 %v849
    %1054 = vmatpush.msra.mxu0 %v848
    %1055 = vmatmul.f32.gmra.mxu0 %v944
    %v1056 = vpop.f32.mrf.mxu0
    %v1057 = vadd.f32 %v1037, %v1056
    %1058 = vdwg.mxu0
    %1059 = vmatpush.msra.mxu0 %v879
    %1060 = vmatpush.msra.mxu0 %v878
    %1061 = vmatpush.msra.mxu0 %v877
    %1062 = vmatpush.msra.mxu0 %v876
    %1063 = vmatpush.msra.mxu0 %v875
    %1064 = vmatpush.msra.mxu0 %v874
    %1065 = vmatpush.msra.mxu0 %v873
    %1066 = vmatpush.msra.mxu0 %v872
    %1067 = vmatpush.msra.mxu0 %v871
    %1068 = vmatpush.msra.mxu0 %v870
    %1069 = vmatpush.msra.mxu0 %v869
    %1070 = vmatpush.msra.mxu0 %v868
    %1071 = vmatpush.msra.mxu0 %v867
    %1072 = vmatpush.msra.mxu0 %v866
    %1073 = vmatpush.msra.mxu0 %v865
    %1074 = vmatpush.msra.mxu0 %v864
    %1075 = vmatmul.f32.gmra.mxu0 %v945
    %v1076 = vpop.f32.mrf.mxu0
    %v1077 = vadd.f32 %v1057, %v1076
    %1078 = vdwg.mxu0
    %1079 = vmatpush.msra.mxu0 %v895
    %1080 = vmatpush.msra.mxu0 %v894
    %1081 = vmatpush.msra.mxu0 %v893
    %1082 = vmatpush.msra.mxu0 %v892
    %1083 = vmatpush.msra.mxu0 %v891
    %1084 = vmatpush.msra.mxu0 %v890
    %1085 = vmatpush.msra.mxu0 %v889
    %1086 = vmatpush.msra.mxu0 %v888
    %1087 = vmatpush.msra.mxu0 %v887
    %1088 = vmatpush.msra.mxu0 %v886
    %1089 = vmatpush.msra.mxu0 %v885
    %1090 = vmatpush.msra.mxu0 %v884
    %1091 = vmatpush.msra.mxu0 %v883
    %1092 = vmatpush.msra.mxu0 %v882
    %1093 = vmatpush.msra.mxu0 %v881
    %1094 = vmatpush.msra.mxu0 %v880
    %1095 = vmatmul.f32.gmra.mxu0 %v946
    %v1096 = vpop.f32.mrf.mxu0
    %v1097 = vadd.f32 %v1077, %v1096
    %1098 = vdwg.mxu0
    %1099 = vmatpush.msra.mxu0 %v911
    %1100 = vmatpush.msra.mxu0 %v910
    %1101 = vmatpush.msra.mxu0 %v909
    %1102 = vmatpush.msra.mxu0 %v908
    %1103 = vmatpush.msra.mxu0 %v907
    %1104 = vmatpush.msra.mxu0 %v906
    %1105 = vmatpush.msra.mxu0 %v905
    %1106 = vmatpush.msra.mxu0 %v904
    %1107 = vmatpush.msra.mxu0 %v903
    %1108 = vmatpush.msra.mxu0 %v902
    %1109 = vmatpush.msra.mxu0 %v901
    %1110 = vmatpush.msra.mxu0 %v900
    %1111 = vmatpush.msra.mxu0 %v899
    %1112 = vmatpush.msra.mxu0 %v898
    %1113 = vmatpush.msra.mxu0 %v897
    %1114 = vmatpush.msra.mxu0 %v896
    %1115 = vmatmul.f32.gmra.mxu0 %v947
    %v1116 = vpop.f32.mrf.mxu0
    %v1117 = vadd.f32 %v1097, %v1116
    %1118 = vdwg.mxu0
    %1119 = vmatpush.msra.mxu0 %v927
    %1120 = vmatpush.msra.mxu0 %v926
    %1121 = vmatpush.msra.mxu0 %v925
    %1122 = vmatpush.msra.mxu0 %v924
    %1123 = vmatpush.msra.mxu0 %v923
    %1124 = vmatpush.msra.mxu0 %v922
    %1125 = vmatpush.msra.mxu0 %v921
    %1126 = vmatpush.msra.mxu0 %v920
    %1127 = vmatpush.msra.mxu0 %v919
    %1128 = vmatpush.msra.mxu0 %v918
    %1129 = vmatpush.msra.mxu0 %v917
    %1130 = vmatpush.msra.mxu0 %v916
    %1131 = vmatpush.msra.mxu0 %v915
    %1132 = vmatpush.msra.mxu0 %v914
    %1133 = vmatpush.msra.mxu0 %v913
    %1134 = vmatpush.msra.mxu0 %v912
    %1135 = vmatmul.f32.gmra.mxu0 %v949
    %v1136 = vpop.f32.mrf.mxu0
    %v1137 = vadd.f32 %v1117, %v1136
    %1138 = vdwg.mxu0
    %1144 = vst [vmem:[#allocation1] ss:$2 sm:$0xff] %v55
    %s1145 = scalar_lea.vmem [#allocation1], 16
    %1146 = vst [vmem:[%s1145] ss:$2 sm:$0xff] %v56
    %s1147 = scalar_lea.vmem [#allocation1], 32
    %1148 = vst [vmem:[%s1147] ss:$2 sm:$0xff] %v57
    %s1149 = scalar_lea.vmem [#allocation1], 48
    %1150 = vst [vmem:[%s1149] ss:$2 sm:$0xff] %v58
    %v1151 = vld.sshfl [vmem:[#allocation1] sm:$0xff pattern:$0x75316420]
    %v1152 = vld.sshfl [vmem:[#allocation1 + $0x8] sm:$0xff pattern:$0x75316420]
    %v1153 = vld.sshfl [vmem:[#allocation1 + $0x10] sm:$0xff pattern:$0x75316420]
    %v1154 = vld.sshfl [vmem:[#allocation1 + $0x18] sm:$0xff pattern:$0x75316420]
    %v1155 = vld.sshfl [vmem:[#allocation1 + $0x20] sm:$0xff pattern:$0x75316420]
    %v1156 = vld.sshfl [vmem:[#allocation1 + $0x28] sm:$0xff pattern:$0x75316420]
    %v1157 = vld.sshfl [vmem:[#allocation1 + $0x30] sm:$0xff pattern:$0x75316420]
    %v1158 = vld.sshfl [vmem:[#allocation1 + $0x38] sm:$0xff pattern:$0x75316420]
    %1159 = vst [vmem:[#allocation1] ss:$2 sm:$0xff] %v59
    %v1160 = vld.sshfl [vmem:[#allocation1] sm:$0xff pattern:$0x75316420]
    %1170 = vmatpush.msra.mxu0 %v799
    %1171 = vmatpush.msra.mxu0 %v798
    %1172 = vmatpush.msra.mxu0 %v797
    %1173 = vmatpush.msra.mxu0 %v796
    %1174 = vmatpush.msra.mxu0 %v795
    %1175 = vmatpush.msra.mxu0 %v794
    %1176 = vmatpush.msra.mxu0 %v793
    %1177 = vmatpush.msra.mxu0 %v792
    %1178 = vmatpush.msra.mxu0 %v791
    %1179 = vmatpush.msra.mxu0 %v790
    %1180 = vmatpush.msra.mxu0 %v789
    %1181 = vmatpush.msra.mxu0 %v788
    %1182 = vmatpush.msra.mxu0 %v787
    %1183 = vmatpush.msra.mxu0 %v786
    %1184 = vmatpush.msra.mxu0 %v785
    %1185 = vmatpush.msra.mxu0 %v784
    %1186 = vmatmul.f32.gmra.mxu0 %v1151
    %v1187 = vpop.f32.mrf.mxu0
    %v1188 = vadd.f32 0.0, %v1187
    %1189 = vdwg.mxu0
    %1190 = vmatpush.msra.mxu0 %v815
    %1191 = vmatpush.msra.mxu0 %v814
    %1192 = vmatpush.msra.mxu0 %v813
    %1193 = vmatpush.msra.mxu0 %v812
    %1194 = vmatpush.msra.mxu0 %v811
    %1195 = vmatpush.msra.mxu0 %v810
    %1196 = vmatpush.msra.mxu0 %v809
    %1197 = vmatpush.msra.mxu0 %v808
    %1198 = vmatpush.msra.mxu0 %v807
    %1199 = vmatpush.msra.mxu0 %v806
    %1200 = vmatpush.msra.mxu0 %v805
    %1201 = vmatpush.msra.mxu0 %v804
    %1202 = vmatpush.msra.mxu0 %v803
    %1203 = vmatpush.msra.mxu0 %v802
    %1204 = vmatpush.msra.mxu0 %v801
    %1205 = vmatpush.msra.mxu0 %v800
    %1206 = vmatmul.f32.gmra.mxu0 %v1152
    %v1207 = vpop.f32.mrf.mxu0
    %v1208 = vadd.f32 %v1188, %v1207
    %1209 = vdwg.mxu0
    %1210 = vmatpush.msra.mxu0 %v831
    %1211 = vmatpush.msra.mxu0 %v830
    %1212 = vmatpush.msra.mxu0 %v829
    %1213 = vmatpush.msra.mxu0 %v828
    %1214 = vmatpush.msra.mxu0 %v827
    %1215 = vmatpush.msra.mxu0 %v826
    %1216 = vmatpush.msra.mxu0 %v825
    %1217 = vmatpush.msra.mxu0 %v824
    %1218 = vmatpush.msra.mxu0 %v823
    %1219 = vmatpush.msra.mxu0 %v822
    %1220 = vmatpush.msra.mxu0 %v821
    %1221 = vmatpush.msra.mxu0 %v820
    %1222 = vmatpush.msra.mxu0 %v819
    %1223 = vmatpush.msra.mxu0 %v818
    %1224 = vmatpush.msra.mxu0 %v817
    %1225 = vmatpush.msra.mxu0 %v816
    %1226 = vmatmul.f32.gmra.mxu0 %v1153
    %v1227 = vpop.f32.mrf.mxu0
    %v1228 = vadd.f32 %v1208, %v1227
    %1229 = vdwg.mxu0
    %1230 = vmatpush.msra.mxu0 %v847
    %1231 = vmatpush.msra.mxu0 %v846
    %1232 = vmatpush.msra.mxu0 %v845
    %1233 = vmatpush.msra.mxu0 %v844
    %1234 = vmatpush.msra.mxu0 %v843
    %1235 = vmatpush.msra.mxu0 %v842
    %1236 = vmatpush.msra.mxu0 %v841
    %1237 = vmatpush.msra.mxu0 %v840
    %1238 = vmatpush.msra.mxu0 %v839
    %1239 = vmatpush.msra.mxu0 %v838
    %1240 = vmatpush.msra.mxu0 %v837
    %1241 = vmatpush.msra.mxu0 %v836
    %1242 = vmatpush.msra.mxu0 %v835
    %1243 = vmatpush.msra.mxu0 %v834
    %1244 = vmatpush.msra.mxu0 %v833
    %1245 = vmatpush.msra.mxu0 %v832
    %1246 = vmatmul.f32.gmra.mxu0 %v1154
    %v1247 = vpop.f32.mrf.mxu0
    %v1248 = vadd.f32 %v1228, %v1247
    %1249 = vdwg.mxu0
    %1250 = vmatpush.msra.mxu0 %v863
    %1251 = vmatpush.msra.mxu0 %v862
    %1252 = vmatpush.msra.mxu0 %v861
    %1253 = vmatpush.msra.mxu0 %v860
    %1254 = vmatpush.msra.mxu0 %v859
    %1255 = vmatpush.msra.mxu0 %v858
    %1256 = vmatpush.msra.mxu0 %v857
    %1257 = vmatpush.msra.mxu0 %v856
    %1258 = vmatpush.msra.mxu0 %v855
    %1259 = vmatpush.msra.mxu0 %v854
    %1260 = vmatpush.msra.mxu0 %v853
    %1261 = vmatpush.msra.mxu0 %v852
    %1262 = vmatpush.msra.mxu0 %v851
    %1263 = vmatpush.msra.mxu0 %v850
    %1264 = vmatpush.msra.mxu0 %v849
    %1265 = vmatpush.msra.mxu0 %v848
    %1266 = vmatmul.f32.gmra.mxu0 %v1155
    %v1267 = vpop.f32.mrf.mxu0
    %v1268 = vadd.f32 %v1248, %v1267
    %1269 = vdwg.mxu0
    %1270 = vmatpush.msra.mxu0 %v879
    %1271 = vmatpush.msra.mxu0 %v878
    %1272 = vmatpush.msra.mxu0 %v877
    %1273 = vmatpush.msra.mxu0 %v876
    %1274 = vmatpush.msra.mxu0 %v875
    %1275 = vmatpush.msra.mxu0 %v874
    %1276 = vmatpush.msra.mxu0 %v873
    %1277 = vmatpush.msra.mxu0 %v872
    %1278 = vmatpush.msra.mxu0 %v871
    %1279 = vmatpush.msra.mxu0 %v870
    %1280 = vmatpush.msra.mxu0 %v869
    %1281 = vmatpush.msra.mxu0 %v868
    %1282 = vmatpush.msra.mxu0 %v867
    %1283 = vmatpush.msra.mxu0 %v866
    %1284 = vmatpush.msra.mxu0 %v865
    %1285 = vmatpush.msra.mxu0 %v864
    %1286 = vmatmul.f32.gmra.mxu0 %v1156
    %v1287 = vpop.f32.mrf.mxu0
    %v1288 = vadd.f32 %v1268, %v1287
    %1289 = vdwg.mxu0
    %1290 = vmatpush.msra.mxu0 %v895
    %1291 = vmatpush.msra.mxu0 %v894
    %1292 = vmatpush.msra.mxu0 %v893
    %1293 = vmatpush.msra.mxu0 %v892
    %1294 = vmatpush.msra.mxu0 %v891
    %1295 = vmatpush.msra.mxu0 %v890
    %1296 = vmatpush.msra.mxu0 %v889
    %1297 = vmatpush.msra.mxu0 %v888
    %1298 = vmatpush.msra.mxu0 %v887
    %1299 = vmatpush.msra.mxu0 %v886
    %1300 = vmatpush.msra.mxu0 %v885
    %1301 = vmatpush.msra.mxu0 %v884
    %1302 = vmatpush.msra.mxu0 %v883
    %1303 = vmatpush.msra.mxu0 %v882
    %1304 = vmatpush.msra.mxu0 %v881
    %1305 = vmatpush.msra.mxu0 %v880
    %1306 = vmatmul.f32.gmra.mxu0 %v1157
    %v1307 = vpop.f32.mrf.mxu0
    %v1308 = vadd.f32 %v1288, %v1307
    %1309 = vdwg.mxu0
    %1310 = vmatpush.msra.mxu0 %v911
    %1311 = vmatpush.msra.mxu0 %v910
    %1312 = vmatpush.msra.mxu0 %v909
    %1313 = vmatpush.msra.mxu0 %v908
    %1314 = vmatpush.msra.mxu0 %v907
    %1315 = vmatpush.msra.mxu0 %v906
    %1316 = vmatpush.msra.mxu0 %v905
    %1317 = vmatpush.msra.mxu0 %v904
    %1318 = vmatpush.msra.mxu0 %v903
    %1319 = vmatpush.msra.mxu0 %v902
    %1320 = vmatpush.msra.mxu0 %v901
    %1321 = vmatpush.msra.mxu0 %v900
    %1322 = vmatpush.msra.mxu0 %v899
    %1323 = vmatpush.msra.mxu0 %v898
    %1324 = vmatpush.msra.mxu0 %v897
    %1325 = vmatpush.msra.mxu0 %v896
    %1326 = vmatmul.f32.gmra.mxu0 %v1158
    %v1327 = vpop.f32.mrf.mxu0
    %v1328 = vadd.f32 %v1308, %v1327
    %1329 = vdwg.mxu0
    %1330 = vmatpush.msra.mxu0 %v927
    %1331 = vmatpush.msra.mxu0 %v926
    %1332 = vmatpush.msra.mxu0 %v925
    %1333 = vmatpush.msra.mxu0 %v924
    %1334 = vmatpush.msra.mxu0 %v923
    %1335 = vmatpush.msra.mxu0 %v922
    %1336 = vmatpush.msra.mxu0 %v921
    %1337 = vmatpush.msra.mxu0 %v920
    %1338 = vmatpush.msra.mxu0 %v919
    %1339 = vmatpush.msra.mxu0 %v918
    %1340 = vmatpush.msra.mxu0 %v917
    %1341 = vmatpush.msra.mxu0 %v916
    %1342 = vmatpush.msra.mxu0 %v915
    %1343 = vmatpush.msra.mxu0 %v914
    %1344 = vmatpush.msra.mxu0 %v913
    %1345 = vmatpush.msra.mxu0 %v912
    %1346 = vmatmul.f32.gmra.mxu0 %v1160
    %v1347 = vpop.f32.mrf.mxu0
    %v1348 = vadd.f32 %v1328, %v1347
    %1349 = vdwg.mxu0
    %s1350 = smul.u32 0, 4
    %v1351 = vstv %s1350
    %v1352 = vadd.s32 %v1351, %v61
    %vm1353 = vcmp.lt.s32.totalorder %v1352, 4
    %v1354 = vsel %vm1353, %v1137, 1.0
    %v1355 = vsel %vm1353, %v1348, 1.0
    %v1356 = vrcp.pop %v1355
    %v1357 = vmul.f32 %v1355, %v1356
    %v1358 = vsub.f32 1.0, %v1357
    %v1359 = vmul.f32 %v1356, %v1358
    %v1360 = vadd.f32 %v1356, %v1359
    %vm1361 = vweird.f32 %v1355
    %vm1362 = vweird.f32 %v1356
    %vm1363 = vmor %vm1361, %vm1362
    %v1364 = vsel %vm1363, %v1356, %v1360
    %v1365 = vand.u32 2147483647, %v1355
    %vm1366 = vcmp.eq.f32.partialorder %v1365, 8.507059e+37
    %v1367 = vand.u32 %v1355, 2147483648
    %v1368 = vor.u32 1.1754944e-38, %v1367
    %v1369 = vsel %vm1366, %v1368, %v1364
    %v1370 = vmul.f32 %v1354, %v1369
    %v1371 = vlog2.pop %v1370
    %v1372 = vmul.f32 %v1371, 0.6931472
    %vm1373 = vcmask 257024
    %v1374 = vsel %vm1373, %v1372, 0.0
    %1375 = vadd.xlane.f32.xlu0 %v1374
    %v1376 = vpop.xlane.xlu0 %1375
    %v1377 = vrot.slane %v1376, 4
    %v1378 = vadd.f32 %v1376, %v1377
    %v1379 = vrot.slane %v1378, 2
    %v1380 = vadd.f32 %v1378, %v1379
    %v1381 = vrot.slane %v1380, 1
    %v1382 = vadd.f32 %v1380, %v1381
    %s1383 = vtos %v1382
    %v1384 = vstv %s1383
    %1385 = vst [vmem:[#allocation7] sm:$0x1] %v1384
    // Predicated region
    $region18: #{tpu_custom_call.1} parent=1 // pred_check
      _
    $region19: #{tpu_custom_call.1} parent=1 // pred_check_branch
      %1387 = sbr.rel (0) target = $region21
    $region20: #{tpu_custom_call.1} parent=1 // pred_region
      %1389 = vsyncadd [#allocation4], 0
      %s1391 = sshll.u32 [#allocation7], 4
      %s1392 = int_to_ptr.vmem [resolvable:$true] %s1391
      %s1393 = sshll.u32 %s2, 4
      %s1394 = int_to_ptr.hbm [resolvable:$true] %s1393
      %1396 = dma.vmem_to_hbm [thread:$0]  %s1392, 16, %s1394, [#allocation4]
    $region21: #{tpu_custom_call.1} parent=1 // pred_fallthru
      _
    // Predicated region
    $region22: #{tpu_custom_call.1} parent=1 // pred_check
      _
    $region23: #{tpu_custom_call.1} parent=1 // pred_check_branch
      %1398 = sbr.rel (0) target = $region25
    $region24: #{tpu_custom_call.1} parent=1 // pred_region
      %1400 = dma.done [#allocation4], 16
    $region25: #{tpu_custom_call.1} parent=1 // pred_fallthru
      _
    %1401 = vsyncpa [#allocation3], 1
    %1402 = vsyncpa [#allocation6], 1
    %1403 = vsyncpa [#allocation4], 1

</llo_original>
